<compile_context>
chip_gen: v5e
topology: v5e:2x2
jax: 0.10.0
libtpu: 0.0.40
codegen_flags: <defaults>
</compile_context>

<pallas_src>
import functools

import jax
import jax.numpy as jnp
from jax.experimental import pallas as pl
from jax.experimental.pallas import tpu as pltpu


def _se_kernel(x_ref, w1_ref, b1_ref, w2_ref, b2_ref, out_ref, acc_ref, *, inv_hw):
    """Accumulate spatial sums over HW chunks; FC epilogue on the last chunk.

    x_ref : (n_tile, C, hw_tile)  streamed input chunk (native dtype)
    w1_ref: (C, Cr)   fc1 weight, pre-transposed     b1_ref: (1, Cr)
    w2_ref: (Cr, C)   fc2 weight, pre-transposed     b2_ref: (1, C)
    out_ref: (n_tile, C)          gate output (written once, last step)
    acc_ref: (n_tile, C) f32      spatial-sum accumulator (VMEM scratch)
    """
    k = pl.program_id(1)

    @pl.when(k == 0)
    def _init():
        acc_ref[...] = jnp.zeros_like(acc_ref)

    # Upcast in-kernel (input may be bf16); accumulate the sum in f32.
    x = x_ref[...].astype(jnp.float32)                 # (n_tile, C, hw_tile)
    acc_ref[...] += jnp.sum(x, axis=-1)                # (n_tile, C)

    @pl.when(k == pl.num_programs(1) - 1)
    def _epilogue():
        pooled = acc_ref[...] * inv_hw                 # mean over the true H*W
        h = jnp.dot(pooled, w1_ref[...], preferred_element_type=jnp.float32)
        h = jnp.maximum(h + b1_ref[...], 0.0)          # ReLU
        z = jnp.dot(h, w2_ref[...], preferred_element_type=jnp.float32)
        z = z + b2_ref[...]
        out_ref[...] = jax.nn.sigmoid(z).astype(out_ref.dtype)


def _pick_tiles(N, C, HW, itemsize, budget_bytes):
    """Pick (n_tile, hw_tile) under a per-buffer VMEM budget.

    The (n_tile, C) output block needs n_tile % 8 == 0 or n_tile == N, so use
    8-row batch tiles when the batch allows it (also gives v7x's two
    TensorCores independent 'parallel' work); otherwise take the full batch.
    The HW tile is the full extent when it fits, else lane-dense multiples of
    128 handled by the accumulator pattern.
    """
    n_tile = 8 if (N % 8 == 0 and N > 8) else N

    row_bytes = n_tile * C * itemsize
    if row_bytes * HW <= budget_bytes:
        hw_tile = HW
    else:
        hw_tile = max(128, (budget_bytes // row_bytes) // 128 * 128)
    return n_tile, hw_tile


def se_block_forward(x_nchw, w1, b1, w2, b2, *, tile_budget_bytes=4 << 20):
    """x_nchw: (N, C, H, W); w1: (Cr, C), b1: (Cr,), w2: (C, Cr), b2: (C,)
    (PyTorch nn.Linear layout).  Returns the (N, C, 1, 1) gate."""
    N, C, H, W = x_nchw.shape
    Cr = w1.shape[0]
    HW = H * W
    out_dtype = x_nchw.dtype

    # Free view; keep the input's native dtype (no HBM-doubling f32 cast).
    x_flat = x_nchw.reshape(N, C, HW)
    itemsize = x_flat.dtype.itemsize

    n_tile, hw_tile = _pick_tiles(N, C, HW, itemsize, tile_budget_bytes)

    # If HW is chunked, zero-pad it up to a multiple of hw_tile: padding does
    # not change the spatial sum, and we divide by the true HW in-kernel.
    hw_padded = HW
    if hw_tile != HW:
        hw_padded = pl.cdiv(HW, hw_tile) * hw_tile
        if hw_padded != HW:
            x_flat = jnp.pad(x_flat, ((0, 0), (0, 0), (0, hw_padded - HW)))
    grid = (N // n_tile, hw_padded // hw_tile)

    # Tiny FC params: pre-transpose to (in, out) so the kernel does row-major
    # matmuls; the f32 cast here is negligible next to streaming x.
    w1_t = jnp.transpose(w1).astype(jnp.float32)       # (C, Cr)
    w2_t = jnp.transpose(w2).astype(jnp.float32)       # (Cr, C)
    b1_r = b1.reshape(1, Cr).astype(jnp.float32)
    b2_r = b2.reshape(1, C).astype(jnp.float32)

    # Scoped-VMEM budget: double-buffered x tiles + params + scratch + slack.
    x_slab_bytes = n_tile * C * hw_tile * itemsize
    vmem_limit = int(min(64 << 20, max(32 << 20, 4 * x_slab_bytes)))

    # This call is bandwidth-heavy; tell XLA's scheduler.
    cost = pl.CostEstimate(
        flops=N * C * HW + 4 * N * C * Cr,
        transcendentals=N * C,
        bytes_accessed=N * C * hw_padded * itemsize
        + (2 * C * Cr + C + Cr) * 4
        + N * C * jnp.dtype(out_dtype).itemsize,
    )

    gate = pl.pallas_call(
        functools.partial(_se_kernel, inv_hw=1.0 / float(HW)),
        out_shape=jax.ShapeDtypeStruct((N, C), out_dtype),
        grid_spec=pltpu.PrefetchScalarGridSpec(
            num_scalar_prefetch=0,
            grid=grid,
            in_specs=[
                # Streamed, pipelined x chunks (lane axis = HW, full C).
                pl.BlockSpec((n_tile, C, hw_tile), lambda i, k: (i, 0, k)),
                # Small FC params stay VMEM-resident (same block every step).
                pl.BlockSpec((C, Cr), lambda i, k: (0, 0)),
                pl.BlockSpec((1, Cr), lambda i, k: (0, 0)),
                pl.BlockSpec((Cr, C), lambda i, k: (0, 0)),
                pl.BlockSpec((1, C), lambda i, k: (0, 0)),
            ],
            # Same output block across the HW (reduction) axis -> resident,
            # written once in the epilogue.
            out_specs=pl.BlockSpec((n_tile, C), lambda i, k: (i, 0)),
            scratch_shapes=[pltpu.VMEM((n_tile, C), jnp.float32)],
        ),
        compiler_params=pltpu.CompilerParams(
            dimension_semantics=("parallel", "arbitrary"),
            vmem_limit_bytes=vmem_limit,
        ),
        cost_estimate=cost,
    )(x_flat, w1_t, b1_r, w2_t, b2_r)

    return gate.reshape(N, C, 1, 1)


if __name__ == "__main__":
    # Small deterministic example: SEBlock(in_channels=64, reduction_ratio=16)
    N, C, H, W = 2, 64, 16, 16
    reduction_ratio = 16
    Cr = C // reduction_ratio  # 4

    key = jax.random.PRNGKey(0)
    kx, k1, k2, k3, k4 = jax.random.split(key, 5)
    x = jax.random.normal(kx, (N, C, H, W), dtype=jnp.float32)
    w1 = jax.random.normal(k1, (Cr, C), dtype=jnp.float32) * 0.1   # fc1.weight (out, in)
    b1 = jax.random.normal(k2, (Cr,), dtype=jnp.float32) * 0.1     # fc1.bias
    w2 = jax.random.normal(k3, (C, Cr), dtype=jnp.float32) * 0.1   # fc2.weight (out, in)
    b2 = jax.random.normal(k4, (C,), dtype=jnp.float32) * 0.1      # fc2.bias

    out = se_block_forward(x, w1, b1, w2, b2)
    jax.block_until_ready(out)

    # Pure-JAX reference check.
    pooled_ref = jnp.mean(x.astype(jnp.float32), axis=(2, 3))
    h_ref = jnp.maximum(pooled_ref @ w1.T + b1, 0.0)
    ref = jax.nn.sigmoid(h_ref @ w2.T + b2).reshape(N, C, 1, 1)
    assert out.shape == (N, C, 1, 1)
    assert jnp.allclose(out.astype(jnp.float32), ref, atol=2e-5, rtol=2e-5)

    print("KERNEL_OK")
</pallas_src>

<mosaic_0001>
module attributes {stable_mosaic.version = 11 : i64} {
  func.func @_se_kernel(%arg0: i32, %arg1: i32, %arg2: memref<2x64x256xf32, #tpu.memory_space<vmem>>, %arg3: memref<64x4xf32, #tpu.memory_space<vmem>>, %arg4: memref<1x4xf32, #tpu.memory_space<vmem>>, %arg5: memref<4x64xf32, #tpu.memory_space<vmem>>, %arg6: memref<1x64xf32, #tpu.memory_space<vmem>>, %arg7: memref<2x64xf32, #tpu.memory_space<vmem>>, %arg8: memref<2x64xf32, #tpu.memory_space<vmem>>) attributes {dimension_semantics = [#tpu.dimension_semantics<parallel>, #tpu.dimension_semantics<arbitrary>], iteration_bounds = array<i64: 1, 1>, scalar_prefetch = 0 : i64, scratch_operands = 1 : i64, tpu.core_type = #tpu.core_type<tc>, window_params = [{transform_indices = @transform_0, window_bounds = array<i64: 2, 64, 256>}, {pipeline_mode = #tpu.pipeline_mode<synchronous>, transform_indices = @transform_1, window_bounds = array<i64: 64, 4>}, {pipeline_mode = #tpu.pipeline_mode<synchronous>, transform_indices = @transform_2, window_bounds = array<i64: 1, 4>}, {pipeline_mode = #tpu.pipeline_mode<synchronous>, transform_indices = @transform_3, window_bounds = array<i64: 4, 64>}, {pipeline_mode = #tpu.pipeline_mode<synchronous>, transform_indices = @transform_4, window_bounds = array<i64: 1, 64>}, {transform_indices = @transform_5, window_bounds = array<i64: 2, 64>}]} {
    %c0_i32 = arith.constant 0 : i32
    %0 = arith.cmpi eq, %arg1, %c0_i32 : i32
    %1 = arith.extui %0 : i1 to i32
    %c0_i32_0 = arith.constant 0 : i32
    %2 = arith.cmpi ne, %1, %c0_i32_0 : i32
    scf.if %2 {
      %cst_9 = arith.constant 0.000000e+00 : f32
      %11 = vector.broadcast %cst_9 : f32 to vector<2x64xf32>
      %c0_10 = arith.constant 0 : index
      %c0_11 = arith.constant 0 : index
      %12 = vector.load %arg8[%c0_10, %c0_11] : memref<2x64xf32, #tpu.memory_space<vmem>>, vector<2x64xf32>
      tpu.vector_store %arg8[%c0_10, %c0_11], %11 {strides = array<i32>} : memref<2x64xf32, #tpu.memory_space<vmem>>, vector<2x64xf32>,
    } else {
    }
    %c0 = arith.constant 0 : index
    %c0_1 = arith.constant 0 : index
    %c0_2 = arith.constant 0 : index
    %3 = vector.load %arg2[%c0, %c0_1, %c0_2] : memref<2x64x256xf32, #tpu.memory_space<vmem>>, vector<2x64x256xf32>
    %c0_3 = arith.constant 0 : index
    %c0_4 = arith.constant 0 : index
    %4 = vector.load %arg8[%c0_3, %c0_4] : memref<2x64xf32, #tpu.memory_space<vmem>>, vector<2x64xf32>
    %cst = arith.constant dense<0.000000e+00> : vector<2x64xf32>
    %5 = vector.multi_reduction <add>, %3, %cst [2] : vector<2x64x256xf32> to vector<2x64xf32>
    %6 = arith.addf %4, %5 : vector<2x64xf32>
    %c0_5 = arith.constant 0 : index
    %c0_6 = arith.constant 0 : index
    %7 = vector.load %arg8[%c0_5, %c0_6] : memref<2x64xf32, #tpu.memory_space<vmem>>, vector<2x64xf32>
    tpu.vector_store %arg8[%c0_5, %c0_6], %6 {strides = array<i32>} : memref<2x64xf32, #tpu.memory_space<vmem>>, vector<2x64xf32>,
    %c0_i32_7 = arith.constant 0 : i32
    %8 = arith.cmpi eq, %arg1, %c0_i32_7 : i32
    %9 = arith.extui %8 : i1 to i32
    %c0_i32_8 = arith.constant 0 : i32
    %10 = arith.cmpi ne, %9, %c0_i32_8 : i32
    scf.if %10 {
      %c0_9 = arith.constant 0 : index
      %c0_10 = arith.constant 0 : index
      %11 = vector.load %arg8[%c0_9, %c0_10] : memref<2x64xf32, #tpu.memory_space<vmem>>, vector<2x64xf32>
      %cst_11 = arith.constant 3.906250e-03 : f32
      %12 = vector.broadcast %cst_11 : f32 to vector<2x64xf32>
      %13 = arith.mulf %11, %12 : vector<2x64xf32>
      %c0_12 = arith.constant 0 : index
      %c0_13 = arith.constant 0 : index
      %14 = vector.load %arg3[%c0_12, %c0_13] : memref<64x4xf32, #tpu.memory_space<vmem>>, vector<64x4xf32>
      %cst_14 = arith.constant dense<0.000000e+00> : vector<2x4xf32>
      %15 = tpu.matmul %13, %14, %cst_14 {dimension_numbers = #tpu.dot_dimension_numbers<[1], [0], [0], [1], [0, 0, 1, 1], [], []>} : vector<2x64xf32>, vector<64x4xf32>, vector<2x4xf32> -> vector<2x4xf32>
      %c0_15 = arith.constant 0 : index
      %c0_16 = arith.constant 0 : index
      %16 = vector.load %arg4[%c0_15, %c0_16] : memref<1x4xf32, #tpu.memory_space<vmem>>, vector<1x4xf32>
      %17 = vector.broadcast %16 : vector<1x4xf32> to vector<2x4xf32>
      %18 = arith.addf %15, %17 : vector<2x4xf32>
      %cst_17 = arith.constant 0.000000e+00 : f32
      %19 = vector.broadcast %cst_17 : f32 to vector<2x4xf32>
      %20 = arith.maximumf %18, %19 : vector<2x4xf32>
      %c0_18 = arith.constant 0 : index
      %c0_19 = arith.constant 0 : index
      %21 = vector.load %arg5[%c0_18, %c0_19] : memref<4x64xf32, #tpu.memory_space<vmem>>, vector<4x64xf32>
      %cst_20 = arith.constant dense<0.000000e+00> : vector<2x64xf32>
      %22 = tpu.matmul %20, %21, %cst_20 {dimension_numbers = #tpu.dot_dimension_numbers<[1], [0], [0], [1], [0, 0, 1, 1], [], []>} : vector<2x4xf32>, vector<4x64xf32>, vector<2x64xf32> -> vector<2x64xf32>
      %c0_21 = arith.constant 0 : index
      %c0_22 = arith.constant 0 : index
      %23 = vector.load %arg6[%c0_21, %c0_22] : memref<1x64xf32, #tpu.memory_space<vmem>>, vector<1x64xf32>
      %24 = vector.broadcast %23 : vector<1x64xf32> to vector<2x64xf32>
      %25 = arith.addf %22, %24 : vector<2x64xf32>
      %26 = arith.negf %25 : vector<2x64xf32>
      %27 = math.exp %26 : vector<2x64xf32>
      %cst_23 = arith.constant 1.000000e+00 : f32
      %28 = vector.broadcast %cst_23 : f32 to vector<2x64xf32>
      %29 = arith.addf %28, %27 : vector<2x64xf32>
      %30 = arith.divf %28, %29 : vector<2x64xf32>
      %c0_24 = arith.constant 0 : index
      %c0_25 = arith.constant 0 : index
      %31 = vector.load %arg7[%c0_24, %c0_25] : memref<2x64xf32, #tpu.memory_space<vmem>>, vector<2x64xf32>
      tpu.vector_store %arg7[%c0_24, %c0_25], %30 {strides = array<i32>} : memref<2x64xf32, #tpu.memory_space<vmem>>, vector<2x64xf32>,
    } else {
    }
    return
  }
  func.func @transform_0(%arg0: i32, %arg1: i32) -> (i32, i32, i32) {
    %c0_i32 = arith.constant 0 : i32
    %c0_i32_0 = arith.constant 0 : i32
    return %arg0, %c0_i32, %arg1 : i32, i32, i32
  }
  func.func @transform_1(%arg0: i32, %arg1: i32) -> (i32, i32) {
    %c0_i32 = arith.constant 0 : i32
    %c0_i32_0 = arith.constant 0 : i32
    %c0_i32_1 = arith.constant 0 : i32
    return %c0_i32, %c0_i32_0 : i32, i32
  }
  func.func @transform_2(%arg0: i32, %arg1: i32) -> (i32, i32) {
    %c0_i32 = arith.constant 0 : i32
    %c0_i32_0 = arith.constant 0 : i32
    %c0_i32_1 = arith.constant 0 : i32
    return %c0_i32, %c0_i32_0 : i32, i32
  }
  func.func @transform_3(%arg0: i32, %arg1: i32) -> (i32, i32) {
    %c0_i32 = arith.constant 0 : i32
    %c0_i32_0 = arith.constant 0 : i32
    %c0_i32_1 = arith.constant 0 : i32
    return %c0_i32, %c0_i32_0 : i32, i32
  }
  func.func @transform_4(%arg0: i32, %arg1: i32) -> (i32, i32) {
    %c0_i32 = arith.constant 0 : i32
    %c0_i32_0 = arith.constant 0 : i32
    %c0_i32_1 = arith.constant 0 : i32
    return %c0_i32, %c0_i32_0 : i32, i32
  }
  func.func @transform_5(%arg0: i32, %arg1: i32) -> (i32, i32) {
    %c0_i32 = arith.constant 0 : i32
    %c0_i32_0 = arith.constant 0 : i32
    return %arg0, %c0_i32 : i32, i32
  }
}

</mosaic_0001>

<llo_original>
// kernel: tpu_custom_call.1
$region0: #{tpu_custom_call.1}
  #allocation0 [shape = 'u32[]', space=smem, size = 0x4, offset = 0x4, fixed_abs, tag = 'smem constant byte address 0x4 - core index']
  #allocation1 [shape = 'u32[72,128]{1,0:T(1,128)}', space=vmem, size = 0x9000, scoped, tag = 'internal scratch']
  #allocation2 [shape = 'f32[2,64]{1,0:T(2,128)}', space=vmem, size = 0x400, scoped, tag = 'scratch operand']
  %s0 = inlined_call_operand.hbm [shape: f32[2,64,256], index: 0, kind: input, shape index: {}]
  %s1 = inlined_call_operand.vmem [shape: f32[64,4], index: 1, kind: input, shape index: {}]
  %s2 = inlined_call_operand.vmem [shape: f32[1,4], index: 2, kind: input, shape index: {}]
  %s3 = inlined_call_operand.vmem [shape: f32[4,64], index: 3, kind: input, shape index: {}]
  %s4 = inlined_call_operand.vmem [shape: f32[1,64], index: 4, kind: input, shape index: {}]
  %s5 = inlined_call_operand.hbm [shape: f32[2,64], index: 5, kind: output, shape index: {}]
  %s6 = sld [smem:[#allocation0]]
  $region42: #{tpu_custom_call.1} parent=0
    _
  %s8 = ssub.s32 1, %s6
  %s9 = scalar_select 0, %s8, %s6
  $region1: #{tpu_custom_call.1} parent=0
    #allocation3 [shape = 'u8[131072]{0}', space=vmem, size = 0x20000, scoped, tag = 'input window, operand 0, single buffered']
    #allocation4 [shape = 's32[1]{0}', space=sflag, size = 0x4, scoped, tag = 'scoped memory for tpu_custom_call.1']
    #allocation5 [shape = 's32[1]{0}', space=sflag, size = 0x4, scoped, tag = 'scoped memory for tpu_custom_call.1']
    #allocation6 [shape = 'u8[1024]{0}', space=vmem, size = 0x400, scoped, tag = 'output window, operand 0, single buffered']
    %10 = vsyncpa [#allocation4], 0
    %11 = vsyncpa [#allocation5], 0
    // Predicated region
    $region2: #{tpu_custom_call.1} parent=1 // pred_check
      _
    $region3: #{tpu_custom_call.1} parent=1 // pred_check_branch
      %13 = sbr.rel (0) target = $region5
    $region4: #{tpu_custom_call.1} parent=1 // pred_region
      %15 = vsyncadd [#allocation4], 0
      %s16 = sshll.u32 %s0, 4
      %s17 = int_to_ptr.hbm [resolvable:$true] %s16
      %s18 = sshll.u32 [#allocation3], 4
      %s19 = int_to_ptr.vmem [resolvable:$true] %s18
      %24 = dma.hbm_to_vmem [thread:$0]  %s17, 4096, %s19, [#allocation4], 256, 256, 16
    $region5: #{tpu_custom_call.1} parent=1 // pred_fallthru
      _
    // Predicated region
    $region6: #{tpu_custom_call.1} parent=1 // pred_check
      _
    $region7: #{tpu_custom_call.1} parent=1 // pred_check_branch
      %26 = sbr.rel (0) target = $region9
    $region8: #{tpu_custom_call.1} parent=1 // pred_region
      _
    $region9: #{tpu_custom_call.1} parent=1 // pred_fallthru
      _
    // Predicated region
    $region10: #{tpu_custom_call.1} parent=1 // pred_check
      _
    $region11: #{tpu_custom_call.1} parent=1 // pred_check_branch
      %28 = sbr.rel (0) target = $region13
    $region12: #{tpu_custom_call.1} parent=1 // pred_region
      _
    $region13: #{tpu_custom_call.1} parent=1 // pred_fallthru
      _
    // Predicated region
    $region14: #{tpu_custom_call.1} parent=1 // pred_check
      _
    $region15: #{tpu_custom_call.1} parent=1 // pred_check_branch
      %30 = sbr.rel (0) target = $region17
    $region16: #{tpu_custom_call.1} parent=1 // pred_region
      _
    $region17: #{tpu_custom_call.1} parent=1 // pred_fallthru
      _
    // Predicated region
    $region18: #{tpu_custom_call.1} parent=1 // pred_check
      _
    $region19: #{tpu_custom_call.1} parent=1 // pred_check_branch
      %32 = sbr.rel (0) target = $region21
    $region20: #{tpu_custom_call.1} parent=1 // pred_region
      _
    $region21: #{tpu_custom_call.1} parent=1 // pred_fallthru
      _
    // Predicated region
    $region22: #{tpu_custom_call.1} parent=1 // pred_check
      _
    $region23: #{tpu_custom_call.1} parent=1 // pred_check_branch
      %34 = sbr.rel (0) target = $region25
    $region24: #{tpu_custom_call.1} parent=1 // pred_region
      %36 = dma.done [#allocation4], 4096
    $region25: #{tpu_custom_call.1} parent=1 // pred_fallthru
      _
    %p37 = scmp.eq.s32.totalorder 0, 0
    // Predicated region
    $region26: #{tpu_custom_call.1} parent=1 // pred_check
      %p38 = pneg %p37
    $region27: #{tpu_custom_call.1} parent=1 // pred_check_branch
      %40 = sbr.rel (%p38) target = $region29
    $region28: #{tpu_custom_call.1} parent=1 // pred_region
      %vm41 = vcmask 517120
      %42 = vst.msk [vmem:[#allocation2] sm:$0x3] %vm41, 0.0
    $region29: #{tpu_custom_call.1} parent=1 // pred_fallthru
      _
    %v43 = vld [vmem:[#allocation3] sm:$0xff]
    %v44 = vld [vmem:[#allocation3 + $0x8] sm:$0xff]
    %v45 = vld [vmem:[#allocation3 + $0x10] sm:$0xff]
    %v46 = vld [vmem:[#allocation3 + $0x18] sm:$0xff]
    %v47 = vld [vmem:[#allocation3 + $0x20] sm:$0xff]
    %v48 = vld [vmem:[#allocation3 + $0x28] sm:$0xff]
    %v49 = vld [vmem:[#allocation3 + $0x30] sm:$0xff]
    %v50 = vld [vmem:[#allocation3 + $0x38] sm:$0xff]
    %v51 = vld [vmem:[#allocation3 + $0x40] sm:$0xff]
    %v52 = vld [vmem:[#allocation3 + $0x48] sm:$0xff]
    %v53 = vld [vmem:[#allocation3 + $0x50] sm:$0xff]
    %v54 = vld [vmem:[#allocation3 + $0x58] sm:$0xff]
    %v55 = vld [vmem:[#allocation3 + $0x60] sm:$0xff]
    %v56 = vld [vmem:[#allocation3 + $0x68] sm:$0xff]
    %v57 = vld [vmem:[#allocation3 + $0x70] sm:$0xff]
    %v58 = vld [vmem:[#allocation3 + $0x78] sm:$0xff]
    %v59 = vld [vmem:[#allocation3 + $0x80] sm:$0xff]
    %v60 = vld [vmem:[#allocation3 + $0x88] sm:$0xff]
    %v61 = vld [vmem:[#allocation3 + $0x90] sm:$0xff]
    %v62 = vld [vmem:[#allocation3 + $0x98] sm:$0xff]
    %v63 = vld [vmem:[#allocation3 + $0xa0] sm:$0xff]
    %v64 = vld [vmem:[#allocation3 + $0xa8] sm:$0xff]
    %v65 = vld [vmem:[#allocation3 + $0xb0] sm:$0xff]
    %v66 = vld [vmem:[#allocation3 + $0xb8] sm:$0xff]
    %v67 = vld [vmem:[#allocation3 + $0xc0] sm:$0xff]
    %v68 = vld [vmem:[#allocation3 + $0xc8] sm:$0xff]
    %v69 = vld [vmem:[#allocation3 + $0xd0] sm:$0xff]
    %v70 = vld [vmem:[#allocation3 + $0xd8] sm:$0xff]
    %v71 = vld [vmem:[#allocation3 + $0xe0] sm:$0xff]
    %v72 = vld [vmem:[#allocation3 + $0xe8] sm:$0xff]
    %v73 = vld [vmem:[#allocation3 + $0xf0] sm:$0xff]
    %v74 = vld [vmem:[#allocation3 + $0xf8] sm:$0xff]
    %v75 = vld [vmem:[#allocation2] sm:$0x3]
    %v76 = vadd.f32 %v43, %v44
    %77 = vadd.xlane.f32.xlu0 %v76
    %v78 = vpop.xlane.xlu0 %77
    %v79 = vadd.f32 %v45, %v46
    %80 = vadd.xlane.f32.xlu0 %v79
    %v81 = vpop.xlane.xlu0 %80
    %v82 = vadd.f32 %v47, %v48
    %83 = vadd.xlane.f32.xlu0 %v82
    %v84 = vpop.xlane.xlu0 %83
    %v85 = vadd.f32 %v49, %v50
    %86 = vadd.xlane.f32.xlu0 %v85
    %v87 = vpop.xlane.xlu0 %86
    %v88 = vadd.f32 %v51, %v52
    %89 = vadd.xlane.f32.xlu0 %v88
    %v90 = vpop.xlane.xlu0 %89
    %v91 = vadd.f32 %v53, %v54
    %92 = vadd.xlane.f32.xlu0 %v91
    %v93 = vpop.xlane.xlu0 %92
    %v94 = vadd.f32 %v55, %v56
    %95 = vadd.xlane.f32.xlu0 %v94
    %v96 = vpop.xlane.xlu0 %95
    %v97 = vadd.f32 %v57, %v58
    %98 = vadd.xlane.f32.xlu0 %v97
    %v99 = vpop.xlane.xlu0 %98
    %v100 = vadd.f32 %v59, %v60
    %101 = vadd.xlane.f32.xlu0 %v100
    %v102 = vpop.xlane.xlu0 %101
    %v103 = vadd.f32 %v61, %v62
    %104 = vadd.xlane.f32.xlu0 %v103
    %v105 = vpop.xlane.xlu0 %104
    %v106 = vadd.f32 %v63, %v64
    %107 = vadd.xlane.f32.xlu0 %v106
    %v108 = vpop.xlane.xlu0 %107
    %v109 = vadd.f32 %v65, %v66
    %110 = vadd.xlane.f32.xlu0 %v109
    %v111 = vpop.xlane.xlu0 %110
    %v112 = vadd.f32 %v67, %v68
    %113 = vadd.xlane.f32.xlu0 %v112
    %v114 = vpop.xlane.xlu0 %113
    %v115 = vadd.f32 %v69, %v70
    %116 = vadd.xlane.f32.xlu0 %v115
    %v117 = vpop.xlane.xlu0 %116
    %v118 = vadd.f32 %v71, %v72
    %119 = vadd.xlane.f32.xlu0 %v118
    %v120 = vpop.xlane.xlu0 %119
    %v121 = vadd.f32 %v73, %v74
    %122 = vadd.xlane.f32.xlu0 %v121
    %v123 = vpop.xlane.xlu0 %122
    %v140 = vlaneseq
    %v141 = vand.u32 %v140, 127
    %v142 = vperm.slane %v78, %v141
    %v143 = vadd.s32 %v141, 4294967288
    %v144 = vperm.slane %v81, %v143
    %vm145 = vcmask 130112
    %v146 = vsel %vm145, %v144, %v142
    %v147 = vadd.s32 %v141, 4294967280
    %v148 = vperm.slane %v84, %v147
    %vm149 = vcmask 195712
    %v150 = vsel %vm149, %v148, %v146
    %v151 = vadd.s32 %v141, 4294967272
    %v152 = vperm.slane %v87, %v151
    %vm153 = vcmask 261312
    %v154 = vsel %vm153, %v152, %v150
    %v155 = vadd.s32 %v141, 4294967264
    %v156 = vperm.slane %v90, %v155
    %vm157 = vcmask 326912
    %v158 = vsel %vm157, %v156, %v154
    %v159 = vadd.s32 %v141, 4294967256
    %v160 = vperm.slane %v93, %v159
    %vm161 = vcmask 392512
    %v162 = vsel %vm161, %v160, %v158
    %v163 = vadd.s32 %v141, 4294967248
    %v164 = vperm.slane %v96, %v163
    %vm165 = vcmask 458112
    %v166 = vsel %vm165, %v164, %v162
    %v167 = vadd.s32 %v141, 4294967240
    %v168 = vperm.slane %v99, %v167
    %vm169 = vcmask 523712
    %v170 = vsel %vm169, %v168, %v166
    %v171 = vperm.slane %v102, %v141
    %v172 = vperm.slane %v105, %v143
    %v173 = vsel %vm145, %v172, %v171
    %v174 = vperm.slane %v108, %v147
    %v175 = vsel %vm149, %v174, %v173
    %v176 = vperm.slane %v111, %v151
    %v177 = vsel %vm153, %v176, %v175
    %v178 = vperm.slane %v114, %v155
    %v179 = vsel %vm157, %v178, %v177
    %v180 = vperm.slane %v117, %v159
    %v181 = vsel %vm161, %v180, %v179
    %v182 = vperm.slane %v120, %v163
    %v183 = vsel %vm165, %v182, %v181
    %v184 = vperm.slane %v123, %v167
    %v185 = vsel %vm169, %v184, %v183
    %vm186 = vcmask 1041409
    %v187 = vsel %vm186, %v185, %v170
    %v189 = vadd.f32 %v75, %v187
    %vm190 = vcmask 517120
    %191 = vst.msk [vmem:[#allocation2] sm:$0x3] %vm190, %v189
    // Predicated region
    $region30: #{tpu_custom_call.1} parent=1 // pred_check
      %p192 = pneg %p37
    $region31: #{tpu_custom_call.1} parent=1 // pred_check_branch
      %194 = sbr.rel (%p192) target = $region33
    $region32: #{tpu_custom_call.1} parent=1 // pred_region
      %v195 = vld [vmem:[#allocation2] sm:$0x3]
      %v196 = vmul.f32 %v195, 0.00390625
      %v197 = vld [vmem:[%s1] sm:$0xff]
      %v198 = vld [vmem:[%s1 + $0x8] sm:$0xff]
      %v199 = vld [vmem:[%s1 + $0x10] sm:$0xff]
      %v200 = vld [vmem:[%s1 + $0x18] sm:$0xff]
      %v201 = vld [vmem:[%s1 + $0x20] sm:$0xff]
      %v202 = vld [vmem:[%s1 + $0x28] sm:$0xff]
      %v203 = vld [vmem:[%s1 + $0x30] sm:$0xff]
      %v204 = vld [vmem:[%s1 + $0x38] sm:$0xff]
      %v205 = vld [vmem:[%s2] sm:$0x1]
      %v207 = vperm.slane %v205, 0
      %vm209 = vcmask 523264
      %v211 = vsel %vm209, %v196, 0
      %213 = vmatpush.msra.mxu0 0.0
      %214 = vmatpush.msra.mxu0 0.0
      %215 = vmatpush.msra.mxu0 0.0
      %216 = vmatpush.msra.mxu0 0.0
      %217 = vmatpush.msra.mxu0 0.0
      %218 = vmatpush.msra.mxu0 0.0
      %219 = vmatpush.msra.mxu0 0.0
      %220 = vmatpush.msra.mxu0 0.0
      %221 = vmatpush.msra.mxu0 %v204
      %222 = vmatpush.msra.mxu0 %v203
      %223 = vmatpush.msra.mxu0 %v202
      %224 = vmatpush.msra.mxu0 %v201
      %225 = vmatpush.msra.mxu0 %v200
      %226 = vmatpush.msra.mxu0 %v199
      %227 = vmatpush.msra.mxu0 %v198
      %228 = vmatpush.msra.mxu0 %v197
      %229 = vmatmul.f32.gmra.mxu0 %v211
      %v230 = vpop.f32.mrf.mxu0
      %v231 = vadd.f32 %v207, %v230
      %232 = vdwg.mxu0
      %v233 = vmax.f32 %v231, 0.0
      %v234 = vld [vmem:[%s3] sm:$0xf]
      %v235 = vld [vmem:[%s4] sm:$0x1]
      %v237 = vperm.slane %v235, 0
      %vm239 = vcmask 31744
      %v241 = vsel %vm239, %v233, 0
      %vm243 = vcmask 1043456
      %v245 = vsel %vm243, %v234, 0
      %247 = vmatpush.msra.mxu0 0.0
      %248 = vmatpush.msra.mxu0 0.0
      %249 = vmatpush.msra.mxu0 0.0
      %250 = vmatpush.msra.mxu0 0.0
      %251 = vmatpush.msra.mxu0 0.0
      %252 = vmatpush.msra.mxu0 0.0
      %253 = vmatpush.msra.mxu0 0.0
      %254 = vmatpush.msra.mxu0 0.0
      %255 = vmatpush.msra.mxu0 0.0
      %256 = vmatpush.msra.mxu0 0.0
      %257 = vmatpush.msra.mxu0 0.0
      %258 = vmatpush.msra.mxu0 0.0
      %259 = vmatpush.msra.mxu0 0.0
      %260 = vmatpush.msra.mxu0 0.0
      %261 = vmatpush.msra.mxu0 0.0
      %262 = vmatpush.msra.mxu0 %v245
      %263 = vmatmul.f32.gmra.mxu0 %v241
      %v264 = vpop.f32.mrf.mxu0
      %v265 = vadd.f32 %v237, %v264
      %266 = vdwg.mxu0
      %v267 = vxor.u32 %v265, 2147483648
      %v268 = vmul.f32 %v267, 1.442695
      %v269 = vpow.pop %v268
      %v270 = vadd.f32 %v269, 1.0
      %v271 = vrcp.pop %v270
      %v272 = vmul.f32 %v270, %v271
      %v273 = vsub.f32 1.0, %v272
      %v274 = vmul.f32 %v271, %v273
      %v275 = vadd.f32 %v271, %v274
      %vm276 = vweird.f32 %v270
      %vm277 = vweird.f32 %v271
      %vm278 = vmor %vm276, %vm277
      %v279 = vsel %vm278, %v271, %v275
      %v280 = vand.u32 2147483647, %v270
      %vm281 = vcmp.eq.f32.partialorder %v280, 8.507059e+37
      %v282 = vand.u32 %v270, 2147483648
      %v283 = vor.u32 1.1754944e-38, %v282
      %v284 = vsel %vm281, %v283, %v279
      %v285 = vmul.f32 1.0, %v284
      %286 = vst.msk [vmem:[#allocation6] sm:$0x3] %vm190, %v285
    $region33: #{tpu_custom_call.1} parent=1 // pred_fallthru
      _
    // Predicated region
    $region34: #{tpu_custom_call.1} parent=1 // pred_check
      _
    $region35: #{tpu_custom_call.1} parent=1 // pred_check_branch
      %288 = sbr.rel (0) target = $region37
    $region36: #{tpu_custom_call.1} parent=1 // pred_region
      %290 = vsyncadd [#allocation5], 0
      %s292 = sshll.u32 [#allocation6], 4
      %s293 = int_to_ptr.vmem [resolvable:$true] %s292
      %s294 = sshll.u32 %s5, 4
      %s295 = int_to_ptr.hbm [resolvable:$true] %s294
      %297 = dma.vmem_to_hbm [thread:$0]  %s293, 32, %s295, [#allocation5]
    $region37: #{tpu_custom_call.1} parent=1 // pred_fallthru
      _
    // Predicated region
    $region38: #{tpu_custom_call.1} parent=1 // pred_check
      _
    $region39: #{tpu_custom_call.1} parent=1 // pred_check_branch
      %299 = sbr.rel (0) target = $region41
    $region40: #{tpu_custom_call.1} parent=1 // pred_region
      %301 = dma.done [#allocation5], 32
    $region41: #{tpu_custom_call.1} parent=1 // pred_fallthru
      _
    %302 = vsyncpa [#allocation4], 1
    %303 = vsyncpa [#allocation5], 1

</llo_original>
